<compile_context>
chip_gen: v7x
topology: tpu7x:2x2x1
jax: 0.10.0
libtpu: 0.0.40
codegen_flags: <defaults>
</compile_context>

<pallas_src>
import functools

import jax
import jax.numpy as jnp
from jax.experimental import pallas as pl
from jax.experimental.pallas import tpu as pltpu


# ----------------------------------------------------------------------------
# Pallas kernel: (classes, C) @ (C, TL) -> (classes, TL)   (lane-dense output)
# ----------------------------------------------------------------------------
def _conv1x1_kernel(w_ref, x_ref, o_ref):
    # w_ref: (classes, C) full weight, x_ref: (C, TL) voxel tile (lanes = voxels).
    o_ref[...] = jnp.dot(
        w_ref[...], x_ref[...], preferred_element_type=jnp.float32
    ).astype(o_ref.dtype)


def _round_up(x, m):
    return ((x + m - 1) // m) * m


def conv3d_1x1(x_ncdhw, w_oc, *, tl_max=4096, compute_dtype=None):
    """Bias-free 1x1x1 Conv3d.

    x_ncdhw: (N, C, D, H, W) float32
    w_oc:    (classes, C)    float32   (PyTorch Conv3d weight squeezed)
    returns  (N, classes, D, H, W) float32

    compute_dtype: optionally jnp.bfloat16 to halve HBM input traffic on
    v6e/v7x (dot operands only; accumulation stays f32).  Default keeps f32
    end-to-end to match the PyTorch module exactly.
    """
    N, C, D, H, W = x_ncdhw.shape
    classes = w_oc.shape[0]
    M = D * H * W

    # Free reshape: NCDHW is already channels-leading, so (N, C, M) is a view.
    x3 = x_ncdhw.reshape(N, C, M)

    if M < 128:
        # Tiny volumes: pallas_call launch/pipeline-fill overhead dominates.
        out3 = jnp.einsum("ncm,kc->nkm", x3, w_oc)
        return out3.reshape(N, classes, D, H, W)

    if compute_dtype is not None:
        x3 = x3.astype(compute_dtype)
        w_oc = w_oc.astype(compute_dtype)

    # Voxel tile on the lane axis: big (fewer DMAs, ~85%+ of HBM roofline),
    # but clamped so a single ragged block covers small volumes.
    TL = min(tl_max, _round_up(M, 128))
    grid = (N, pl.cdiv(M, TL))

    out3 = pl.pallas_call(
        _conv1x1_kernel,
        out_shape=jax.ShapeDtypeStruct((N, classes, M), jnp.float32),
        grid_spec=pltpu.PrefetchScalarGridSpec(
            num_scalar_prefetch=0,
            grid=grid,
            in_specs=[
                # Full weight, resident across the whole grid.
                pl.BlockSpec((classes, C), lambda n, m: (0, 0)),
                # One (C, TL) voxel slab per grid step; batch dim squeezed.
                pl.BlockSpec((None, C, TL), lambda n, m: (n, 0, m)),
            ],
            # Lane-dense output slab (classes on sublanes, voxels on lanes).
            out_specs=pl.BlockSpec((None, classes, TL), lambda n, m: (n, 0, m)),
        ),
        compiler_params=pltpu.CompilerParams(
            dimension_semantics=("parallel", "parallel"),
        ),
    )(w_oc, x3)

    return out3.reshape(N, classes, D, H, W)


# ----------------------------------------------------------------------------
# SemSegHead module (JAX side glue mirroring the PyTorch module)
# ----------------------------------------------------------------------------
class SemSegHead:
    """Predicts voxel semantic segmentation (Pallas-backed forward)."""

    def __init__(self, cfg, key):
        self.multi_scale = cfg["MULTI_SCALE"]
        self.loss_weight = cfg["LOSS_WEIGHT"]
        channels = cfg["BACKBONE3D_CHANNELS"]
        scales = len(channels) - 1
        final_size = int(cfg["VOXEL_SIZE"] * 100)
        classes = cfg["NUM_CLASSES"]

        if self.multi_scale:
            self.voxel_sizes = [final_size * 2 ** i for i in range(scales)][::-1]
            dec_channels = list(channels[:-1])[::-1]
        else:
            self.voxel_sizes = [final_size]
            dec_channels = [channels[0]]

        # Deterministic weight init (shapes match nn.Conv3d(c, classes, 1, bias=False):
        # weight (classes, c, 1, 1, 1) -> squeezed to (classes, c)).
        self.decoder_weights = []
        for c in dec_channels:
            key, sub = jax.random.split(key)
            bound = 1.0 / jnp.sqrt(float(c))
            w = jax.random.uniform(
                sub, (classes, c), dtype=jnp.float32, minval=-bound, maxval=bound
            )
            self.decoder_weights.append(w)

    def __call__(self, xs, targets=None):
        output = {}
        losses = {}
        if not self.multi_scale:
            xs = xs[-1:]
        for voxel_size, w, x in zip(self.voxel_sizes, self.decoder_weights, xs):
            key = "vol_%02d_semseg" % voxel_size
            output[key] = conv3d_1x1(x, w)
            # TODO(synk): training-time masked cross_entropy loss path (only
            # used when targets are given) is not implemented as a Pallas kernel.
        return output, losses


# ----------------------------------------------------------------------------
if __name__ == "__main__":
    cfg = {
        "MULTI_SCALE": True,
        "LOSS_WEIGHT": 1.0,
        "BACKBONE3D_CHANNELS": [16, 32, 64],  # scales = 2
        "VOXEL_SIZE": 0.04,                   # final_size = 4 cm
        "NUM_CLASSES": 8,
    }

    root_key = jax.random.PRNGKey(0)
    k_head, k_x0, k_x1 = jax.random.split(root_key, 3)

    head = SemSegHead(cfg, k_head)

    # Multi-scale feature volumes (coarse -> fine), matching decoder channel
    # order [32, 16] and voxel sizes [8, 4].  Both scales have M = D*H*W >= 128
    # so both go through the Pallas kernel (coarse M=512, fine M=4096).
    N = 2
    x_coarse = jax.random.normal(k_x0, (N, 32, 8, 8, 8), dtype=jnp.float32)
    x_fine = jax.random.normal(k_x1, (N, 16, 16, 16, 16), dtype=jnp.float32)
    xs = [x_coarse, x_fine]

    output, losses = head(xs, targets=None)
    for v in output.values():
        jax.block_until_ready(v)

    # Cross-check against a plain-JAX reference (einsum 1x1x1 conv).
    ok = True
    for (vs, w, x) in zip(head.voxel_sizes, head.decoder_weights, xs):
        name = "vol_%02d_semseg" % vs
        ref = jnp.einsum("ncdhw,kc->nkdhw", x, w)
        got = output[name]
        ok = ok and bool(jnp.allclose(ref, got, atol=1e-4, rtol=1e-4))
        assert got.shape == ref.shape and got.dtype == jnp.float32

    if ok:
        print("KERNEL_OK")
</pallas_src>

<mosaic_0001>
module attributes {stable_mosaic.version = 11 : i64} {
  func.func @_conv1x1_kernel(%arg0: i32, %arg1: i32, %arg2: memref<8x32xf32, #tpu.memory_space<vmem>>, %arg3: memref<1x32x512xf32, #tpu.memory_space<vmem>>, %arg4: memref<1x8x512xf32, #tpu.memory_space<vmem>>) attributes {dimension_semantics = [#tpu.dimension_semantics<parallel>, #tpu.dimension_semantics<parallel>], iteration_bounds = array<i64: 2, 1>, scalar_prefetch = 0 : i64, scratch_operands = 0 : i64, tpu.core_type = #tpu.core_type<tc>, window_params = [{pipeline_mode = #tpu.pipeline_mode<synchronous>, transform_indices = @transform_0, window_bounds = array<i64: 8, 32>}, {transform_indices = @transform_1, window_bounds = array<i64: 1, 32, 512>}, {transform_indices = @transform_2, window_bounds = array<i64: 1, 8, 512>}]} {
    %c0 = arith.constant 0 : index
    %c0_0 = arith.constant 0 : index
    %0 = vector.load %arg2[%c0, %c0_0] : memref<8x32xf32, #tpu.memory_space<vmem>>, vector<8x32xf32>
    %c0_1 = arith.constant 0 : index
    %c0_2 = arith.constant 0 : index
    %c0_3 = arith.constant 0 : index
    %1 = vector.load %arg3[%c0_1, %c0_2, %c0_3] : memref<1x32x512xf32, #tpu.memory_space<vmem>>, vector<1x32x512xf32>
    %2 = vector.shape_cast %1 : vector<1x32x512xf32> to vector<32x512xf32>
    %cst = arith.constant dense<0.000000e+00> : vector<8x512xf32>
    %3 = tpu.matmul %0, %2, %cst {dimension_numbers = #tpu.dot_dimension_numbers<[1], [0], [0], [1], [0, 0, 1, 1], [], []>} : vector<8x32xf32>, vector<32x512xf32>, vector<8x512xf32> -> vector<8x512xf32>
    %c0_4 = arith.constant 0 : index
    %c0_5 = arith.constant 0 : index
    %c0_6 = arith.constant 0 : index
    %4 = vector.load %arg4[%c0_4, %c0_5, %c0_6] : memref<1x8x512xf32, #tpu.memory_space<vmem>>, vector<1x8x512xf32>
    %5 = vector.shape_cast %4 : vector<1x8x512xf32> to vector<8x512xf32>
    %6 = vector.shape_cast %3 : vector<8x512xf32> to vector<1x8x512xf32>
    tpu.vector_store %arg4[%c0_4, %c0_5, %c0_6], %6 {strides = array<i32>} : memref<1x8x512xf32, #tpu.memory_space<vmem>>, vector<1x8x512xf32>,
    return
  }
  func.func @transform_0(%arg0: i32, %arg1: i32) -> (i32, i32) {
    %c0_i32 = arith.constant 0 : i32
    %c0_i32_0 = arith.constant 0 : i32
    %c0_i32_1 = arith.constant 0 : i32
    return %c0_i32, %c0_i32_0 : i32, i32
  }
  func.func @transform_1(%arg0: i32, %arg1: i32) -> (i32, i32, i32) {
    %c0_i32 = arith.constant 0 : i32
    %c0_i32_0 = arith.constant 0 : i32
    return %arg0, %c0_i32, %arg1 : i32, i32, i32
  }
  func.func @transform_2(%arg0: i32, %arg1: i32) -> (i32, i32, i32) {
    %c0_i32 = arith.constant 0 : i32
    %c0_i32_0 = arith.constant 0 : i32
    return %arg0, %c0_i32, %arg1 : i32, i32, i32
  }
}

</mosaic_0001>

<llo_original>
// kernel: tpu_custom_call.1
$region0: #{tpu_custom_call.1}
  #allocation0 [shape = 'u32[]', space=smem, size = 0x4, offset = 0x4, fixed_abs, tag = 'smem constant byte address 0x4 - core index']
  #allocation1 [shape = 'u32[144,128]{1,0:T(1,128)}', space=vmem, size = 0x12000, scoped, tag = 'internal scratch']
  %s0 = inlined_call_operand.hbm [shape: f32[8,32], index: 0, kind: input, shape index: {}]
  %s1 = inlined_call_operand.hbm [shape: f32[2,32,512], index: 1, kind: input, shape index: {}]
  %s2 = inlined_call_operand.hbm [shape: f32[2,8,512], index: 2, kind: output, shape index: {}]
  %s3 = sld [smem:[#allocation0]]
  $region49: #{tpu_custom_call.1} parent=0
    _
  %s5 = ssub.s32 1, %s3
  %s6 = scalar_select 0, %s5, %s3
  $region1: #{tpu_custom_call.1} parent=0
    #allocation2 [shape = 'u8[4096]{0}', space=vmem, size = 0x1000, scoped, tag = 'input window, operand 0, single buffered']
    #allocation3 [shape = 's32[2]{0}', space=sflag, size = 0x8, scoped, tag = 'scoped memory for tpu_custom_call.1']
    #allocation4 [shape = 's32[2]{0}', space=sflag, size = 0x8, scoped, tag = 'scoped memory for tpu_custom_call.1']
    #allocation5 [shape = 'u8[131072]{0}', space=vmem, size = 0x20000, scoped, tag = 'input window, operand 1']
    #allocation6 [shape = 's32[2]{0}', space=sflag, size = 0x8, scoped, tag = 'scoped memory for tpu_custom_call.1']
    #allocation7 [shape = 'u8[32768]{0}', space=vmem, size = 0x8000, scoped, tag = 'output window, operand 0']
    %7 = vsyncpa [#allocation3], 0
    %8 = vsyncpa [#allocation6], 0
    %s9 = scalar_lea.sflag [#allocation6], 1
    %10 = vsyncpa %s9, 0
    %11 = vsyncpa [#allocation4], 0
    %s12 = scalar_lea.sflag [#allocation4], 1
    %13 = vsyncpa %s12, 0
    loop: start=0, step=1, limit=4
    $region2: #{tpu_custom_call.1} parent=1 // loop_pre_header
      _
    $region3: #{tpu_custom_call.1} parent=1 // loop_header
      %s15 = sphi 0, %s19
      %p16 = scmp.ge.s32.totalorder %s15, 4
      %s22 = sphi 0, %s34
      %s23 = sphi 0, %s30
      %s24 = sphi 0, %s22
      %s25 = sphi 0, %s23
      %s26 = sphi 0, %s24
      %s27 = sphi 0, %s25
      %s35 = sphi 0, %s35
      %s37 = sphi 0, %s35
      %s38 = sphi 0, %s37
      %s52 = sphi 0, %s38
      %s60 = sphi 0, %s62
      %s63 = sphi 0, %s60
      %s64 = sphi 0, %s63
      %s80 = sphi 0, %s64
      %s88 = sphi 0, %s90
      %s91 = sphi 0, %s88
      %s92 = sphi 0, %s91
      %s108 = sphi 0, %s92
    $region4: #{tpu_custom_call.1} parent=1 // loop_header_branch
      %18 = sbr.rel (%p16) target = $region8
    $region5: #{tpu_custom_call.1} parent=1 // loop_body
      %s20 = ssub.s32 %s15, 1
      %s21 = ssub.s32 %s15, 2
      %s28 = sadd.s32 1, %s23
      %p29 = scmp.ge.s32.totalorder %s28, 1
      %s30 = scalar_select %p29, 0, %s28
      %s31 = sadd.s32 1, %s22
      %s32 = scalar_select %p29, %s31, %s22
      %p33 = scmp.ge.s32.totalorder %s32, 2
      %s34 = scalar_select %p33, 0, %s32
      %s36 = sadd.s32 %s35, 1
      %p39 = scmp.eq.s32.totalorder %s15, 1
      %p40 = scmp.ne.s32.totalorder %s35, %s37
      %p41 = scmp.eq.s32.totalorder %s15, 0
      %p42 = por %p40, %p41
      %p43 = scmp.ne.s32.totalorder %s35, %s37
      %p44 = scmp.eq.s32.totalorder %s20, 1
      %p45 = por %p43, %p44
      %p46 = scmp.ne.s32.totalorder %s37, %s38
      %p47 = scmp.eq.s32.totalorder %s20, 0
      %p48 = por %p46, %p47
      %p49 = scmp.ne.s32.totalorder %s37, %s38
      %p50 = scmp.eq.s32.totalorder %s21, 1
      %p51 = por %p49, %p50
      %p53 = scmp.ne.s32.totalorder %s38, %s52
      %p54 = scmp.eq.s32.totalorder %s21, 0
      %p55 = por %p53, %p54
      %s56 = ssub.s32 %s22, %s34
      %s57 = ssub.s32 %s23, %s30
      %s58 = sor.u32 %s56, %s57
      %p59 = scmp.eq.s32.totalorder %s58, 0
      %s61 = sadd.s32 %s60, 1
      %s62 = scalar_select %p59, %s60, %s61
      %p65 = pneg %p59
      %p66 = scmp.eq.s32.totalorder %s15, 1
      %p67 = por %p65, %p66
      %p68 = scmp.ne.s32.totalorder %s60, %s63
      %p69 = scmp.eq.s32.totalorder %s15, 0
      %p70 = por %p68, %p69
      %p71 = scmp.ne.s32.totalorder %s60, %s63
      %p72 = scmp.eq.s32.totalorder %s20, 1
      %p73 = por %p71, %p72
      %p74 = scmp.ne.s32.totalorder %s63, %s64
      %p75 = scmp.eq.s32.totalorder %s20, 0
      %p76 = por %p74, %p75
      %p77 = scmp.ne.s32.totalorder %s63, %s64
      %p78 = scmp.eq.s32.totalorder %s21, 1
      %p79 = por %p77, %p78
      %p81 = scmp.ne.s32.totalorder %s64, %s80
      %p82 = scmp.eq.s32.totalorder %s21, 0
      %p83 = por %p81, %p82
      %s84 = ssub.s32 %s22, %s34
      %s85 = ssub.s32 %s23, %s30
      %s86 = sor.u32 %s84, %s85
      %p87 = scmp.eq.s32.totalorder %s86, 0
      %s89 = sadd.s32 %s88, 1
      %s90 = scalar_select %p87, %s88, %s89
      %p93 = pneg %p87
      %p94 = scmp.eq.s32.totalorder %s15, 1
      %p95 = por %p93, %p94
      %p96 = scmp.ne.s32.totalorder %s88, %s91
      %p97 = scmp.eq.s32.totalorder %s15, 0
      %p98 = por %p96, %p97
      %p99 = scmp.ne.s32.totalorder %s88, %s91
      %p100 = scmp.eq.s32.totalorder %s20, 1
      %p101 = por %p99, %p100
      %p102 = scmp.ne.s32.totalorder %s91, %s92
      %p103 = scmp.eq.s32.totalorder %s20, 0
      %p104 = por %p102, %p103
      %p105 = scmp.ne.s32.totalorder %s91, %s92
      %p106 = scmp.eq.s32.totalorder %s21, 1
      %p107 = por %p105, %p106
      %p109 = scmp.ne.s32.totalorder %s92, %s108
      %p110 = scmp.eq.s32.totalorder %s21, 0
      %p111 = por %p109, %p110
      %p112 = scmp.le.s32.totalorder 1, %s15
      %p113 = scmp.lt.s32.totalorder %s15, 3
      %p114 = pnand %p112, %p113
      %p115 = pneg %p114
      // Predicated region
      $region9: #{tpu_custom_call.1} parent=5 // pred_check
        _
      $region10: #{tpu_custom_call.1} parent=5 // pred_check_branch
        %117 = sbr.rel (%p114) target = $region12
      $region11: #{tpu_custom_call.1} parent=5 // pred_region
        %s118 = ssub.s32 %s15, 1
        // Predicated region
        $region13: #{tpu_custom_call.1} parent=11 // pred_check
          %p119 = pneg %p48
        $region14: #{tpu_custom_call.1} parent=11 // pred_check_branch
          %121 = sbr.rel (%p119) target = $region16
        $region15: #{tpu_custom_call.1} parent=11 // pred_region
          %s123 = ssub.s32 128, 128
          %124 = vsyncadd [#allocation3], %s123
          %s126 = sshll.u32 [#allocation2], 4
          %s127 = int_to_ptr.vmem [resolvable:$true] %s126
          %129 = dma.hbm_to_vmem [thread:$0]  %s0, 128, %s127, [#allocation3]
        $region16: #{tpu_custom_call.1} parent=11 // pred_fallthru
          _
      $region12: #{tpu_custom_call.1} parent=5 // pred_fallthru
        _
      %p130 = scmp.lt.s32.totalorder %s15, 2
      // Predicated region
      $region17: #{tpu_custom_call.1} parent=5 // pred_check
        %p131 = pneg %p130
      $region18: #{tpu_custom_call.1} parent=5 // pred_check_branch
        %133 = sbr.rel (%p131) target = $region20
      $region19: #{tpu_custom_call.1} parent=5 // pred_region
        // Predicated region
        $region21: #{tpu_custom_call.1} parent=19 // pred_check
          %p134 = pneg %p70
        $region22: #{tpu_custom_call.1} parent=19 // pred_check_branch
          %136 = sbr.rel (%p134) target = $region24
        $region23: #{tpu_custom_call.1} parent=19 // pred_region
          %s137 = sand.u32 %s60, 1
          %s138 = scalar_lea.sflag [#allocation6], %s137
          %s139 = sand.u32 %s60, 1
          %s140 = smul.addr %s139, 128
          %s141 = scalar_lea.vmem [#allocation5], %s140
          %s142 = smul.u32 4, %s23
          %s144 = ssub.s32 2048, 2048
          %145 = vsyncadd %s138, %s144
          %s146 = smul.addr %s22, 16
          %s147 = sadd.s32 %s142, %s146
          %s148 = smul.addr %s147, 128
          %s149 = scalar_lea.hbm %s1, %s148
          %s150 = sshll.u32 %s141, 4
          %s151 = int_to_ptr.vmem [resolvable:$true] %s150
          %156 = dma.hbm_to_vmem [thread:$0]  %s149, 2048, %s151, %s138, 512, 512, 32
        $region24: #{tpu_custom_call.1} parent=19 // pred_fallthru
          _
      $region20: #{tpu_custom_call.1} parent=5 // pred_fallthru
        _
      %p157 = scmp.le.s32.totalorder 1, %s15
      %p158 = scmp.lt.s32.totalorder %s15, 3
      %p159 = pnand %p157, %p158
      %p160 = pneg %p159
      // Predicated region
      $region25: #{tpu_custom_call.1} parent=5 // pred_check
        _
      $region26: #{tpu_custom_call.1} parent=5 // pred_check_branch
        %162 = sbr.rel (%p159) target = $region28
      $region27: #{tpu_custom_call.1} parent=5 // pred_region
        %s163 = ssub.s32 %s15, 1
        // Predicated region
        $region29: #{tpu_custom_call.1} parent=27 // pred_check
          %p164 = pneg %p48
        $region30: #{tpu_custom_call.1} parent=27 // pred_check_branch
          %166 = sbr.rel (%p164) target = $region32
        $region31: #{tpu_custom_call.1} parent=27 // pred_region
          %167 = dma.done [#allocation3], 128
        $region32: #{tpu_custom_call.1} parent=27 // pred_fallthru
          _
        %s168 = sand.u32 %s63, 1
        %s169 = scalar_lea.sflag [#allocation6], %s168
        %s170 = sand.u32 %s63, 1
        %s171 = smul.addr %s170, 128
        %s172 = scalar_lea.vmem [#allocation5], %s171
        // Predicated region
        $region33: #{tpu_custom_call.1} parent=27 // pred_check
          %p173 = pneg %p76
        $region34: #{tpu_custom_call.1} parent=27 // pred_check_branch
          %175 = sbr.rel (%p173) target = $region36
        $region35: #{tpu_custom_call.1} parent=27 // pred_region
          %176 = dma.done %s169, 2048
        $region36: #{tpu_custom_call.1} parent=27 // pred_fallthru
          _
        %p177 = pneg %p48
        %p178 = pneg %p45
        %s179 = sand.u32 %s63, 1
        %s180 = scalar_lea.sflag [#allocation6], %s179
        %s181 = sand.u32 %s63, 1
        %s182 = smul.addr %s181, 128
        %s183 = scalar_lea.vmem [#allocation5], %s182
        %p184 = pneg %p76
        %p185 = pneg %p73
        %p186 = pneg %p104
        %p187 = pneg %p101
        %s188 = sand.u32 %s91, 1
        %s189 = scalar_lea.sflag [#allocation4], %s188
        %s190 = sand.u32 %s91, 1
        %s191 = smul.addr %s190, 32
        %s192 = scalar_lea.vmem [#allocation7], %s191
        %s193 = smul.u32 4, %s25
        %s194 = smul.u32 4, %s25
        %v195 = vld [vmem:[#allocation2] sm:$0xff]
        %v196 = vld [vmem:[%s172] sm:$0xff]
        %v197 = vld [vmem:[%s172 + $0x8] sm:$0xff]
        %v198 = vld [vmem:[%s172 + $0x10] sm:$0xff]
        %v199 = vld [vmem:[%s172 + $0x18] sm:$0xff]
        %v200 = vld [vmem:[%s172 + $0x20] sm:$0xff]
        %v201 = vld [vmem:[%s172 + $0x28] sm:$0xff]
        %v202 = vld [vmem:[%s172 + $0x30] sm:$0xff]
        %v203 = vld [vmem:[%s172 + $0x38] sm:$0xff]
        %v204 = vld [vmem:[%s172 + $0x40] sm:$0xff]
        %v205 = vld [vmem:[%s172 + $0x48] sm:$0xff]
        %v206 = vld [vmem:[%s172 + $0x50] sm:$0xff]
        %v207 = vld [vmem:[%s172 + $0x58] sm:$0xff]
        %v208 = vld [vmem:[%s172 + $0x60] sm:$0xff]
        %v209 = vld [vmem:[%s172 + $0x68] sm:$0xff]
        %v210 = vld [vmem:[%s172 + $0x70] sm:$0xff]
        %v211 = vld [vmem:[%s172 + $0x78] sm:$0xff]
        %vm212 = vcmask 261120
        %v214 = vsel %vm212, %v195, 0
        %216 = vmatprep.subr.mxu0 %v197
        %217 = vmatpush1.msra.mxu0 %v196
        %218 = vmatprep.subr.mxu0 %v201
        %219 = vmatpush1.msra.mxu0 %v200
        %220 = vmatprep.subr.mxu0 %v205
        %221 = vmatpush1.msra.mxu0 %v204
        %222 = vmatprep.subr.mxu0 %v209
        %223 = vmatpush1.msra.mxu0 %v208
        %224 = vmatprep.subr.mxu0 0.0
        %225 = vmatpush1.msra.mxu0 0.0
        %226 = vmatprep.subr.mxu0 0.0
        %227 = vmatpush1.msra.mxu0 0.0
        %228 = vmatprep.subr.mxu0 0.0
        %229 = vmatpush1.msra.mxu0 0.0
        %230 = vmatprep.subr.mxu0 0.0
        %231 = vmatpush1.msra.mxu0 0.0
        %232 = vmatprep.subr.mxu0 0.0
        %233 = vmatpush1.msra.mxu0 0.0
        %234 = vmatprep.subr.mxu0 0.0
        %235 = vmatpush1.msra.mxu0 0.0
        %236 = vmatprep.subr.mxu0 0.0
        %237 = vmatpush1.msra.mxu0 0.0
        %238 = vmatprep.subr.mxu0 0.0
        %239 = vmatpush1.msra.mxu0 0.0
        %240 = vmatprep.subr.mxu0 0.0
        %241 = vmatpush1.msra.mxu0 0.0
        %242 = vmatprep.subr.mxu0 0.0
        %243 = vmatpush1.msra.mxu0 0.0
        %244 = vmatprep.subr.mxu0 0.0
        %245 = vmatpush1.msra.mxu0 0.0
        %246 = vmatprep.subr.mxu0 0.0
        %247 = vmatpush1.msra.mxu0 0.0
        %248 = vmatprep.subr.mxu0 0.0
        %249 = vmatpush1.msra.mxu0 0.0
        %250 = vmatprep.subr.mxu0 0.0
        %251 = vmatpush1.msra.mxu0 0.0
        %252 = vmatprep.subr.mxu0 0.0
        %253 = vmatpush1.msra.mxu0 0.0
        %254 = vmatprep.subr.mxu0 0.0
        %255 = vmatpush1.msra.mxu0 0.0
        %256 = vmatprep.subr.mxu0 0.0
        %257 = vmatpush1.msra.mxu0 0.0
        %258 = vmatprep.subr.mxu0 0.0
        %259 = vmatpush1.msra.mxu0 0.0
        %260 = vmatprep.subr.mxu0 0.0
        %261 = vmatpush1.msra.mxu0 0.0
        %262 = vmatprep.subr.mxu0 0.0
        %263 = vmatpush1.msra.mxu0 0.0
        %264 = vmatprep.subr.mxu0 0.0
        %265 = vmatpush1.msra.mxu0 0.0
        %266 = vmatprep.subr.mxu0 0.0
        %267 = vmatpush1.msra.mxu0 0.0
        %268 = vmatprep.subr.mxu0 0.0
        %269 = vmatpush1.msra.mxu0 0.0
        %270 = vmatprep.subr.mxu0 0.0
        %271 = vmatpush1.msra.mxu0 0.0
        %272 = vmatprep.subr.mxu0 0.0
        %273 = vmatpush1.msra.mxu0 0.0
        %274 = vmatprep.subr.mxu0 0.0
        %275 = vmatpush1.msra.mxu0 0.0
        %276 = vmatprep.subr.mxu0 0.0
        %277 = vmatpush1.msra.mxu0 0.0
        %278 = vmatprep.subr.mxu0 0.0
        %279 = vmatpush1.msra.mxu0 0.0
        %280 = vmatprep.mubr.f32.mxu0 0.0
        %281 = vmatmul.mubr.f32.gmra.mrb[0].mxu0 %v214
        %v282 = vpop.f32.mrb[0].mxu0
        %v283 = vadd.f32 0.0, %v282
        %v284 = vpop.f32.mrb[0].mxu0
        %v285 = vadd.f32 0.0, %v284
        %286 = vdwg.mxu0
        %287 = vmatprep.subr.mxu0 %v199
        %288 = vmatpush1.msra.mxu0 %v198
        %289 = vmatprep.subr.mxu0 %v203
        %290 = vmatpush1.msra.mxu0 %v202
        %291 = vmatprep.subr.mxu0 %v207
        %292 = vmatpush1.msra.mxu0 %v206
        %293 = vmatprep.subr.mxu0 %v211
        %294 = vmatpush1.msra.mxu0 %v210
        %295 = vmatprep.subr.mxu0 0.0
        %296 = vmatpush1.msra.mxu0 0.0
        %297 = vmatprep.subr.mxu0 0.0
        %298 = vmatpush1.msra.mxu0 0.0
        %299 = vmatprep.subr.mxu0 0.0
        %300 = vmatpush1.msra.mxu0 0.0
        %301 = vmatprep.subr.mxu0 0.0
        %302 = vmatpush1.msra.mxu0 0.0
        %303 = vmatprep.subr.mxu0 0.0
        %304 = vmatpush1.msra.mxu0 0.0
        %305 = vmatprep.subr.mxu0 0.0
        %306 = vmatpush1.msra.mxu0 0.0
        %307 = vmatprep.subr.mxu0 0.0
        %308 = vmatpush1.msra.mxu0 0.0
        %309 = vmatprep.subr.mxu0 0.0
        %310 = vmatpush1.msra.mxu0 0.0
        %311 = vmatprep.subr.mxu0 0.0
        %312 = vmatpush1.msra.mxu0 0.0
        %313 = vmatprep.subr.mxu0 0.0
        %314 = vmatpush1.msra.mxu0 0.0
        %315 = vmatprep.subr.mxu0 0.0
        %316 = vmatpush1.msra.mxu0 0.0
        %317 = vmatprep.subr.mxu0 0.0
        %318 = vmatpush1.msra.mxu0 0.0
        %319 = vmatprep.subr.mxu0 0.0
        %320 = vmatpush1.msra.mxu0 0.0
        %321 = vmatprep.subr.mxu0 0.0
        %322 = vmatpush1.msra.mxu0 0.0
        %323 = vmatprep.subr.mxu0 0.0
        %324 = vmatpush1.msra.mxu0 0.0
        %325 = vmatprep.subr.mxu0 0.0
        %326 = vmatpush1.msra.mxu0 0.0
        %327 = vmatprep.subr.mxu0 0.0
        %328 = vmatpush1.msra.mxu0 0.0
        %329 = vmatprep.subr.mxu0 0.0
        %330 = vmatpush1.msra.mxu0 0.0
        %331 = vmatprep.subr.mxu0 0.0
        %332 = vmatpush1.msra.mxu0 0.0
        %333 = vmatprep.subr.mxu0 0.0
        %334 = vmatpush1.msra.mxu0 0.0
        %335 = vmatprep.subr.mxu0 0.0
        %336 = vmatpush1.msra.mxu0 0.0
        %337 = vmatprep.subr.mxu0 0.0
        %338 = vmatpush1.msra.mxu0 0.0
        %339 = vmatprep.subr.mxu0 0.0
        %340 = vmatpush1.msra.mxu0 0.0
        %341 = vmatprep.subr.mxu0 0.0
        %342 = vmatpush1.msra.mxu0 0.0
        %343 = vmatprep.subr.mxu0 0.0
        %344 = vmatpush1.msra.mxu0 0.0
        %345 = vmatprep.subr.mxu0 0.0
        %346 = vmatpush1.msra.mxu0 0.0
        %347 = vmatprep.subr.mxu0 0.0
        %348 = vmatpush1.msra.mxu0 0.0
        %349 = vmatprep.subr.mxu0 0.0
        %350 = vmatpush1.msra.mxu0 0.0
        %351 = vmatprep.mubr.f32.mxu0 0.0
        %352 = vmatmul.mubr.f32.gmra.mrb[0].mxu0 %v214
        %v353 = vpop.f32.mrb[0].mxu0
        %v354 = vadd.f32 0.0, %v353
        %v355 = vpop.f32.mrb[0].mxu0
        %v356 = vadd.f32 0.0, %v355
        %357 = vdwg.mxu0
        %358 = vst [vmem:[%s192] sm:$0xff] %v283
        %359 = vst [vmem:[%s192 + $0x8] sm:$0xff] %v285
        %360 = vst [vmem:[%s192 + $0x10] sm:$0xff] %v354
        %361 = vst [vmem:[%s192 + $0x18] sm:$0xff] %v356
        %s362 = sand.u32 %s91, 1
        %s363 = scalar_lea.sflag [#allocation4], %s362
        %s364 = sand.u32 %s91, 1
        %s365 = smul.addr %s364, 32
        %s366 = scalar_lea.vmem [#allocation7], %s365
        // Predicated region
        $region37: #{tpu_custom_call.1} parent=27 // pred_check
          %p367 = pneg %p101
        $region38: #{tpu_custom_call.1} parent=27 // pred_check_branch
          %369 = sbr.rel (%p367) target = $region40
        $region39: #{tpu_custom_call.1} parent=27 // pred_region
          %s370 = smul.u32 4, %s25
          %s372 = ssub.s32 512, 512
          %373 = vsyncadd %s363, %s372
          %s374 = smul.addr %s24, 4
          %s375 = sadd.s32 %s370, %s374
          %s376 = smul.addr %s375, 128
          %s377 = scalar_lea.hbm %s2, %s376
          %s379 = sshll.u32 %s366, 4
          %s380 = int_to_ptr.vmem [resolvable:$true] %s379
          %382 = dma.vmem_to_hbm [thread:$0]  %s380, 512, %s377, %s363
        $region40: #{tpu_custom_call.1} parent=27 // pred_fallthru
          _
      $region28: #{tpu_custom_call.1} parent=5 // pred_fallthru
        _
      %p383 = scmp.le.s32.totalorder 2, %s15
      // Predicated region
      $region41: #{tpu_custom_call.1} parent=5 // pred_check
        %p384 = pneg %p383
      $region42: #{tpu_custom_call.1} parent=5 // pred_check_branch
        %386 = sbr.rel (%p384) target = $region44
      $region43: #{tpu_custom_call.1} parent=5 // pred_region
        %s387 = ssub.s32 %s15, 2
        // Predicated region
        $region45: #{tpu_custom_call.1} parent=43 // pred_check
          %p388 = pneg %p107
        $region46: #{tpu_custom_call.1} parent=43 // pred_check_branch
          %390 = sbr.rel (%p388) target = $region48
        $region47: #{tpu_custom_call.1} parent=43 // pred_region
          %s391 = sand.u32 %s92, 1
          %s392 = scalar_lea.sflag [#allocation4], %s391
          %s393 = sand.u32 %s92, 1
          %s394 = smul.addr %s393, 32
          %s395 = scalar_lea.vmem [#allocation7], %s394
          %396 = dma.done %s392, 512
        $region48: #{tpu_custom_call.1} parent=43 // pred_fallthru
          _
      $region44: #{tpu_custom_call.1} parent=5 // pred_fallthru
        _
    $region6: #{tpu_custom_call.1} parent=1 // loop_footer
      %s19 = sadd.s32 1, %s15
    $region7: #{tpu_custom_call.1} parent=1 // loop_footer_branch
      %14 = sbr.rel target = $region3
    $region8: #{tpu_custom_call.1} parent=1 // loop_exit
      _
    %397 = vsyncpa [#allocation3], 1
    %s398 = scalar_lea.sflag [#allocation3], 1
    %399 = vsyncpa %s398, 1
    %400 = vsyncpa [#allocation6], 1
    %s401 = scalar_lea.sflag [#allocation6], 1
    %402 = vsyncpa %s401, 1
    %403 = vsyncpa [#allocation4], 1
    %s404 = scalar_lea.sflag [#allocation4], 1
    %405 = vsyncpa %s404, 1

</llo_original>
